<compile_context>
chip_gen: v6e
topology: v6e:2x2x1
jax: 0.10.0
libtpu: 0.0.40
codegen_flags: <defaults>
</compile_context>

<pallas_src>
import jax
import jax.numpy as jnp
from jax.experimental import pallas as pl
from jax.experimental.pallas import tpu as pltpu


def _ordinal_softmax_kernel(x0_ref, x1_ref, prob_ref):
    # clamp exactly like torch.clamp(min=1e-8, max=1e8)
    c0 = jnp.clip(x0_ref[...].astype(jnp.float32), 1e-08, 1e08)
    c1 = jnp.clip(x1_ref[...].astype(jnp.float32), 1e-08, 1e08)
    # softmax([c0, c1])[1] == 1 / (1 + exp(c0 - c1))  (stable: overflow -> 0,
    # underflow -> 1).  Exact division keeps bit-level parity tight.
    prob_ref[...] = 1.0 / (1.0 + jnp.exp(c0 - c1))


def _choose_tm(M: int, K: int, target_bytes: int = 1 << 20) -> int:
    """Rows per tile: ~target_bytes of f32 per buffer, multiple of 8, or all of M."""
    rows = max(8, target_bytes // max(1, K * 4))
    rows = max(8, (rows // 8) * 8)
    return M if rows >= M else rows


def ordinal_regression_layer(x: jax.Array) -> jax.Array:
    """x: (N, C, H, W), C even. Returns prob: (N, C//2, H, W) float32."""
    N, C, H, W = x.shape
    assert C % 2 == 0, "channel dim must be even"
    ord_num = C // 2
    M = N * ord_num
    K = H * W

    tm = _choose_tm(M, K)
    grid = (pl.cdiv(M, tm),)
    cparams = pltpu.CompilerParams(dimension_semantics=("parallel",))
    out_shape = jax.ShapeDtypeStruct((M, K), jnp.float32)
    out_spec = pl.BlockSpec((tm, K), lambda i: (i, 0))

    if K % 128 == 0:
        # Fused deinterleave: row m of xp = [even-channel HW | odd-channel HW].
        # Lane-block 0 of each row is the even channel, lane-block 1 the odd one.
        xp = x.reshape(M, 2 * K)
        prob_flat = pl.pallas_call(
            _ordinal_softmax_kernel,
            out_shape=out_shape,
            grid=grid,
            in_specs=[
                pl.BlockSpec((tm, K), lambda i: (i, 0)),  # even channels
                pl.BlockSpec((tm, K), lambda i: (i, 1)),  # odd channels
            ],
            out_specs=out_spec,
            compiler_params=cparams,
        )(xp, xp)
    else:
        # TODO(synk): pad H*W up to a lane multiple to keep the split fused when
        # K % 128 != 0; fallback does the deinterleave in XLA but stays tiled.
        x0 = x[:, 0::2, :, :].reshape(M, K)
        x1 = x[:, 1::2, :, :].reshape(M, K)
        prob_flat = pl.pallas_call(
            _ordinal_softmax_kernel,
            out_shape=out_shape,
            grid=grid,
            in_specs=[
                pl.BlockSpec((tm, K), lambda i: (i, 0)),
                pl.BlockSpec((tm, K), lambda i: (i, 0)),
            ],
            out_specs=out_spec,
            compiler_params=cparams,
        )(x0, x1)

    return prob_flat.reshape(N, ord_num, H, W)


def _reference(x: jax.Array) -> jax.Array:
    """Pure-JAX reference mirroring the PyTorch forward."""
    N, C, H, W = x.shape
    ord_num = C // 2
    label_0 = x[:, 0::2, :, :].reshape(N, 1, ord_num, H, W)
    label_1 = x[:, 1::2, :, :].reshape(N, 1, ord_num, H, W)
    label = jnp.concatenate((label_0, label_1), axis=1)
    label = jnp.clip(label, 1e-08, 1e08)
    label_ord = jax.nn.softmax(label, axis=1)
    return label_ord[:, 1, :, :, :]


if __name__ == "__main__":
    # Small shapes consistent with the module's forward: N=2, C=8 (ord_num=4), H=W=16.
    key = jax.random.PRNGKey(0)
    x = jax.random.normal(key, (2, 8, 16, 16), dtype=jnp.float32) * 3.0

    prob = ordinal_regression_layer(x)
    prob = jax.block_until_ready(prob)

    ref = _reference(x.astype(jnp.float32))
    assert prob.shape == (2, 4, 16, 16)
    assert jnp.allclose(prob, ref, atol=1e-6, rtol=1e-6), "mismatch vs reference"

    print("KERNEL_OK")
</pallas_src>

<mosaic_0001>
module attributes {stable_mosaic.version = 11 : i64} {
  func.func @_ordinal_softmax_kernel(%arg0: i32, %arg1: memref<8x256xf32, #tpu.memory_space<vmem>>, %arg2: memref<8x256xf32, #tpu.memory_space<vmem>>, %arg3: memref<8x256xf32, #tpu.memory_space<vmem>>) attributes {dimension_semantics = [#tpu.dimension_semantics<parallel>], iteration_bounds = array<i64: 1>, scalar_prefetch = 0 : i64, scratch_operands = 0 : i64, tpu.core_type = #tpu.core_type<tc>, window_params = [{transform_indices = @transform_0, window_bounds = array<i64: 8, 256>}, {transform_indices = @transform_1, window_bounds = array<i64: 8, 256>}, {transform_indices = @transform_2, window_bounds = array<i64: 8, 256>}]} {
    %c0 = arith.constant 0 : index
    %c0_0 = arith.constant 0 : index
    %0 = vector.load %arg1[%c0, %c0_0] : memref<8x256xf32, #tpu.memory_space<vmem>>, vector<8x256xf32>
    %cst = arith.constant 9.99999993E-9 : f32
    %cst_1 = arith.constant 1.000000e+08 : f32
    %1 = vector.broadcast %cst : f32 to vector<8x256xf32>
    %2 = arith.maximumf %1, %0 : vector<8x256xf32>
    %3 = vector.broadcast %cst_1 : f32 to vector<8x256xf32>
    %4 = arith.minimumf %3, %2 : vector<8x256xf32>
    %c0_2 = arith.constant 0 : index
    %c0_3 = arith.constant 0 : index
    %5 = vector.load %arg2[%c0_2, %c0_3] : memref<8x256xf32, #tpu.memory_space<vmem>>, vector<8x256xf32>
    %cst_4 = arith.constant 9.99999993E-9 : f32
    %cst_5 = arith.constant 1.000000e+08 : f32
    %6 = vector.broadcast %cst_4 : f32 to vector<8x256xf32>
    %7 = arith.maximumf %6, %5 : vector<8x256xf32>
    %8 = vector.broadcast %cst_5 : f32 to vector<8x256xf32>
    %9 = arith.minimumf %8, %7 : vector<8x256xf32>
    %10 = arith.subf %4, %9 : vector<8x256xf32>
    %11 = math.exp %10 : vector<8x256xf32>
    %cst_6 = arith.constant 1.000000e+00 : f32
    %12 = vector.broadcast %cst_6 : f32 to vector<8x256xf32>
    %13 = arith.addf %12, %11 : vector<8x256xf32>
    %cst_7 = arith.constant 1.000000e+00 : f32
    %14 = vector.broadcast %cst_7 : f32 to vector<8x256xf32>
    %15 = arith.divf %14, %13 : vector<8x256xf32>
    %c0_8 = arith.constant 0 : index
    %c0_9 = arith.constant 0 : index
    %16 = vector.load %arg3[%c0_8, %c0_9] : memref<8x256xf32, #tpu.memory_space<vmem>>, vector<8x256xf32>
    tpu.vector_store %arg3[%c0_8, %c0_9], %15 {strides = array<i32>} : memref<8x256xf32, #tpu.memory_space<vmem>>, vector<8x256xf32>,
    return
  }
  func.func @transform_0(%arg0: i32) -> (i32, i32) {
    %c0_i32 = arith.constant 0 : i32
    %c0_i32_0 = arith.constant 0 : i32
    return %arg0, %c0_i32 : i32, i32
  }
  func.func @transform_1(%arg0: i32) -> (i32, i32) {
    %c1_i32 = arith.constant 1 : i32
    %c0_i32 = arith.constant 0 : i32
    return %arg0, %c1_i32 : i32, i32
  }
  func.func @transform_2(%arg0: i32) -> (i32, i32) {
    %c0_i32 = arith.constant 0 : i32
    %c0_i32_0 = arith.constant 0 : i32
    return %arg0, %c0_i32 : i32, i32
  }
}

</mosaic_0001>

<llo_original>
// kernel: tpu_custom_call.1
$region0: #{tpu_custom_call.1}
  #allocation0 [shape = 'u32[]', space=smem, size = 0x4, offset = 0x4, fixed_abs, tag = 'smem constant byte address 0x4 - core index']
  #allocation1 [shape = 'u32[144,128]{1,0:T(1,128)}', space=vmem, size = 0x12000, scoped, tag = 'internal scratch']
  %s0 = inlined_call_operand.hbm [shape: f32[8,512], index: 0, kind: input, shape index: {}]
  %s1 = inlined_call_operand.hbm [shape: f32[8,512], index: 1, kind: input, shape index: {}]
  %s2 = inlined_call_operand.hbm [shape: f32[8,256], index: 2, kind: output, shape index: {}]
  %s3 = sld [smem:[#allocation0]]
  $region26: #{tpu_custom_call.1} parent=0
    _
  %s5 = ssub.s32 1, %s3
  %s6 = scalar_select 0, %s5, %s3
  $region1: #{tpu_custom_call.1} parent=0
    #allocation2 [shape = 'u8[8192]{0}', space=vmem, size = 0x2000, scoped, tag = 'input window, operand 0, single buffered']
    #allocation3 [shape = 's32[1]{0}', space=sflag, size = 0x4, scoped, tag = 'scoped memory for tpu_custom_call.1']
    #allocation4 [shape = 's32[1]{0}', space=sflag, size = 0x4, scoped, tag = 'scoped memory for tpu_custom_call.1']
    #allocation5 [shape = 'u8[8192]{0}', space=vmem, size = 0x2000, scoped, tag = 'input window, operand 1, single buffered']
    #allocation6 [shape = 's32[1]{0}', space=sflag, size = 0x4, scoped, tag = 'scoped memory for tpu_custom_call.1']
    #allocation7 [shape = 'u8[8192]{0}', space=vmem, size = 0x2000, scoped, tag = 'output window, operand 0, single buffered']
    %7 = vsyncpa [#allocation3], 0
    %8 = vsyncpa [#allocation6], 0
    %9 = vsyncpa [#allocation4], 0
    // Predicated region
    $region2: #{tpu_custom_call.1} parent=1 // pred_check
      _
    $region3: #{tpu_custom_call.1} parent=1 // pred_check_branch
      %11 = sbr.rel (0) target = $region5
    $region4: #{tpu_custom_call.1} parent=1 // pred_region
      %s13 = ssub.s32 256, 256
      %14 = vsyncadd [#allocation3], %s13
      %s16 = sshll.u32 [#allocation2], 4
      %s17 = int_to_ptr.vmem [resolvable:$true] %s16
      %19 = dma.hbm_to_vmem [thread:$0]  %s0, 256, %s17, [#allocation3]
    $region5: #{tpu_custom_call.1} parent=1 // pred_fallthru
      _
    // Predicated region
    $region6: #{tpu_custom_call.1} parent=1 // pred_check
      _
    $region7: #{tpu_custom_call.1} parent=1 // pred_check_branch
      %21 = sbr.rel (0) target = $region9
    $region8: #{tpu_custom_call.1} parent=1 // pred_region
      %s23 = ssub.s32 256, 256
      %24 = vsyncadd [#allocation6], %s23
      %s25 = scalar_lea.hbm %s1, 256
      %s27 = sshll.u32 [#allocation5], 4
      %s28 = int_to_ptr.vmem [resolvable:$true] %s27
      %30 = dma.hbm_to_vmem [thread:$0]  %s25, 256, %s28, [#allocation6]
    $region9: #{tpu_custom_call.1} parent=1 // pred_fallthru
      _
    // Predicated region
    $region10: #{tpu_custom_call.1} parent=1 // pred_check
      _
    $region11: #{tpu_custom_call.1} parent=1 // pred_check_branch
      %32 = sbr.rel (0) target = $region13
    $region12: #{tpu_custom_call.1} parent=1 // pred_region
      %33 = dma.done [#allocation3], 256
    $region13: #{tpu_custom_call.1} parent=1 // pred_fallthru
      _
    // Predicated region
    $region14: #{tpu_custom_call.1} parent=1 // pred_check
      _
    $region15: #{tpu_custom_call.1} parent=1 // pred_check_branch
      %35 = sbr.rel (0) target = $region17
    $region16: #{tpu_custom_call.1} parent=1 // pred_region
      %36 = dma.done [#allocation6], 256
    $region17: #{tpu_custom_call.1} parent=1 // pred_fallthru
      _
    %v37 = vld [vmem:[#allocation2] sm:$0xff]
    %v38 = vld [vmem:[#allocation2 + $0x8] sm:$0xff]
    %v39 = vmax.f32 %v37, 1e-08
    %v40 = vmax.f32 %v38, 1e-08
    %v41 = vmin.f32 %v39, 1e+08
    %v42 = vmin.f32 %v40, 1e+08
    %v43 = vld [vmem:[#allocation5] sm:$0xff]
    %v44 = vld [vmem:[#allocation5 + $0x8] sm:$0xff]
    %v45 = vmax.f32 %v43, 1e-08
    %v46 = vmax.f32 %v44, 1e-08
    %v47 = vmin.f32 %v45, 1e+08
    %v48 = vmin.f32 %v46, 1e+08
    %v49 = vsub.f32 %v41, %v47
    %v50 = vsub.f32 %v42, %v48
    %v51 = vmul.f32 %v49, 1.442695
    %v52 = vpow.pop %v51
    %v53 = vmul.f32 %v50, 1.442695
    %v54 = vpow.pop %v53
    %v55 = vadd.f32 %v52, 1.0
    %v56 = vadd.f32 %v54, 1.0
    %v57 = vrcp.pop %v55
    %v58 = vmul.f32 1.0, %v57
    %v59 = vrcp.pop %v56
    %v60 = vmul.f32 1.0, %v59
    %61 = vst [vmem:[#allocation7] sm:$0xff] %v58
    %62 = vst [vmem:[#allocation7 + $0x8] sm:$0xff] %v60
    // Predicated region
    $region18: #{tpu_custom_call.1} parent=1 // pred_check
      _
    $region19: #{tpu_custom_call.1} parent=1 // pred_check_branch
      %64 = sbr.rel (0) target = $region21
    $region20: #{tpu_custom_call.1} parent=1 // pred_region
      %s66 = ssub.s32 256, 256
      %67 = vsyncadd [#allocation4], %s66
      %s69 = sshll.u32 [#allocation7], 4
      %s70 = int_to_ptr.vmem [resolvable:$true] %s69
      %72 = dma.vmem_to_hbm [thread:$0]  %s70, 256, %s2, [#allocation4]
    $region21: #{tpu_custom_call.1} parent=1 // pred_fallthru
      _
    // Predicated region
    $region22: #{tpu_custom_call.1} parent=1 // pred_check
      _
    $region23: #{tpu_custom_call.1} parent=1 // pred_check_branch
      %74 = sbr.rel (0) target = $region25
    $region24: #{tpu_custom_call.1} parent=1 // pred_region
      %75 = dma.done [#allocation4], 256
    $region25: #{tpu_custom_call.1} parent=1 // pred_fallthru
      _
    %76 = vsyncpa [#allocation3], 1
    %77 = vsyncpa [#allocation6], 1
    %78 = vsyncpa [#allocation4], 1

</llo_original>
